<compile_context>
chip_gen: v5e
topology: v5e:2x2
jax: 0.10.0
libtpu: 0.0.40
codegen_flags: <defaults>
</compile_context>

<pallas_src>
import math

import numpy as np
import jax
import jax.numpy as jnp
from jax import lax
from jax.experimental import pallas as pl
from jax.experimental.pallas import tpu as pltpu


# ----------------------------------------------------------------------------
# Mask construction (matches MaskedConv.__init__)
# ----------------------------------------------------------------------------
def build_mask(k, exclusive):
    """Python (static) mask, identical to the PyTorch buffer."""
    m = [[1.0] * k for _ in range(k)]
    mid = k // 2
    cut = mid + (0 if exclusive else 1)   # mask[mid, mid + (not exclusive):] = 0
    for j in range(cut, k):
        m[mid][j] = 0.0
    for i in range(mid + 1, k):           # mask[mid + 1:, :] = 0
        for j in range(k):
            m[i][j] = 0.0
    return m


# ----------------------------------------------------------------------------
# Parameter initialization (deterministic, mimics MaskedConv init semantics:
# weight *= mask; weight *= sqrt(numel / mask.sum()); forward applies mask again)
# ----------------------------------------------------------------------------
def init_params(key, net_depth, net_width, kernel_size):
    K = kernel_size
    specs = [(1, 1 if net_depth == 1 else net_width, True)]        # first, exclusive
    for _ in range(net_depth - 2):
        specs.append((net_width, net_width, False))                # middle blocks
    if net_depth > 1:
        specs.append((net_width, 1, False))                        # final
    params = []
    for cin, cout, exclusive in specs:
        key, kw_, kb_ = jax.random.split(key, 3)
        mask = build_mask(K, exclusive)
        mask_arr = jnp.array(mask, jnp.float32)
        scale = math.sqrt(K * K / float(sum(sum(r) for r in mask)))
        w0 = jax.random.normal(kw_, (K, K, cin, cout), jnp.float32) * 0.1
        w = w0 * mask_arr[:, :, None, None] * scale
        b = jax.random.normal(kb_, (1, cout), jnp.float32) * 0.1
        params.append(dict(w=w, b=b, mask=mask))
    return params


# ----------------------------------------------------------------------------
# Host-side weight packing: banded per-kernel-row matrices + tiled bias slabs.
# The mask is (re-)applied here, matching PyTorch's forward (mask * weight).
# ----------------------------------------------------------------------------
def pack_params(params, H, W):
    K = int(params[0]["w"].shape[0])
    pad = (K - 1) // 2
    layer_dims = [(int(p["w"].shape[2]), int(p["w"].shape[3])) for p in params]
    cnet = layer_dims[0][1]                      # width of intermediate activations
    for cin, _ in layer_dims[1:]:
        assert cin == cnet
    for _, cout in layer_dims[:-1]:
        assert cout == cnet
    assert layer_dims[-1][1] == 1                # last conv maps to 1 channel

    arrays, used_rows = [], []
    for l, p in enumerate(params):
        w = np.asarray(p["w"], dtype=np.float32)          # (K, K, cin, cout)
        mask = p["mask"]
        cin, cout = layer_dims[l]
        rows = [ki for ki in range(K) if any(mask[ki][kj] != 0.0 for kj in range(K))]
        used_rows.append(rows)
        for ki in rows:
            # M[jin*cin + ci, j*cout + co] = mask[ki, kj] * w[ki, kj, ci, co]
            # with jin = j + kj - pad; out-of-range jin == horizontal zero pad.
            M = np.zeros((W * cin, W * cout), np.float32)
            for kj in range(K):
                if mask[ki][kj] == 0.0:                   # statically drop masked taps
                    continue
                for j in range(W):
                    jin = j + kj - pad
                    if 0 <= jin < W:
                        M[jin * cin:(jin + 1) * cin, j * cout:(j + 1) * cout] = w[ki, kj]
            arrays.append(jnp.asarray(M))
        b = np.asarray(p["b"], dtype=np.float32).reshape(cout)
        arrays.append(jnp.asarray(np.tile(b, W).reshape(1, W * cout)))  # bias slab
    return dict(arrays=arrays, used_rows=used_rows, layer_dims=layer_dims,
                K=K, pad=pad, cnet=cnet, H=H, W=W)


# ----------------------------------------------------------------------------
# Fused Pallas kernel: the whole network for one batch element per grid step.
# ----------------------------------------------------------------------------
def make_fused_kernel(H, W, pad, layer_dims, used_rows, cnet):
    n_layers = len(layer_dims)

    def kernel(*args):
        # args = (x0_ref, *weight/bias refs..., o_ref, buf_ref)
        x0_ref = args[0]
        o_ref = args[-2]
        buf_ref = args[-1]
        wrefs = args[1:-2]

        # Zero the padded-activation scratch; the top `pad` rows are the
        # vertical zero padding, the interior is overwritten every layer.
        buf_ref[...] = jnp.zeros((pad + H, W * cnet), jnp.float32)

        x0 = x0_ref[0]                                # (pad+H, W), Cin0 == 1
        ptr = 0
        for l, (cin, cout) in enumerate(layer_dims):
            src = x0 if l == 0 else buf_ref[...]      # (pad+H, W*cin)
            acc = None
            for ki in used_rows[l]:                   # statically-unmasked rows only
                lhs = src[ki:ki + H, :]               # (H, W*cin)  sublane shift only
                m = wrefs[ptr][...]                   # (W*cin, W*cout) banded weight
                ptr += 1
                part = jnp.dot(lhs, m, preferred_element_type=jnp.float32)
                acc = part if acc is None else acc + part
            acc = acc + wrefs[ptr][...]               # bias slab (1, W*cout)
            ptr += 1
            if l < n_layers - 1:
                # ReLU before the next conv; ReLU(0) == 0 keeps the zero border exact.
                buf_ref[pad:pad + H, :] = jnp.maximum(acc, 0.0)
            else:
                o_ref[0] = jax.nn.sigmoid(acc)        # (H, W): last layer Cout == 1

    return kernel


def forward_pallas(packed, x_nchw):
    H, W = packed["H"], packed["W"]
    pad, cnet = packed["pad"], packed["cnet"]
    layer_dims, used_rows = packed["layer_dims"], packed["used_rows"]
    arrs = packed["arrays"]
    N = x_nchw.shape[0]

    # One-time tiny vertical pad of the (single-channel) input: (N, pad+H, W).
    x0 = jnp.pad(x_nchw[:, 0, :, :].astype(jnp.float32), ((0, 0), (pad, 0), (0, 0)))

    kernel = make_fused_kernel(H, W, pad, layer_dims, used_rows, cnet)

    in_specs = [pl.BlockSpec((1, pad + H, W), lambda n: (n, 0, 0))]
    for a in arrs:                                    # all packed arrays are 2-D
        in_specs.append(pl.BlockSpec(a.shape, lambda n: (0, 0)))

    out = pl.pallas_call(
        kernel,
        out_shape=jax.ShapeDtypeStruct((N, H, W), jnp.float32),
        grid_spec=pltpu.PrefetchScalarGridSpec(
            num_scalar_prefetch=0,
            grid=(N,),
            in_specs=in_specs,
            out_specs=pl.BlockSpec((1, H, W), lambda n: (n, 0, 0)),
            scratch_shapes=[pltpu.VMEM((pad + H, W * cnet), jnp.float32)],
        ),
        compiler_params=pltpu.CompilerParams(
            dimension_semantics=("parallel",)),       # v7x: 2 TCs take the batch
    )(x0, *arrs)
    return out[:, None, :, :]                         # (N, 1, H, W)  NCHW


# ----------------------------------------------------------------------------
# Pure-JAX reference (lax conv) for correctness checking.
# ----------------------------------------------------------------------------
def forward_reference(params, x_nchw):
    x = x_nchw.astype(jnp.float32)
    n = len(params)
    for i, p in enumerate(params):
        if i > 0:
            x = jax.nn.relu(x)
        w_oihw = jnp.transpose(p["w"], (3, 2, 0, 1))
        pad = (p["w"].shape[0] - 1) // 2
        x = lax.conv_general_dilated(
            x, w_oihw, window_strides=(1, 1),
            padding=((pad, pad), (pad, pad)),
            dimension_numbers=("NCHW", "OIHW", "NCHW"))
        x = x + p["b"][0][None, :, None, None]
        if i == n - 1:
            x = jax.nn.sigmoid(x)
    return x


# TODO(synk): sample() (sequential torch.bernoulli autoregressive L*L loop) and
# log_prob() are host-side driver logic around forward(); not implemented here.

if __name__ == "__main__":
    # Small config consistent with the module: L x L binary lattice, 1 input channel.
    L = 16
    net_depth = 3
    net_width = 8
    kernel_size = 3
    batch = 2

    key = jax.random.PRNGKey(0)
    key, kx = jax.random.split(key)
    params = init_params(key, net_depth, net_width, kernel_size)
    x = jax.random.normal(kx, (batch, 1, L, L), jnp.float32)       # NCHW

    packed = pack_params(params, L, L)
    out = jax.block_until_ready(forward_pallas(packed, x))
    ref = jax.block_until_ready(forward_reference(params, x))

    assert out.shape == (batch, 1, L, L)
    assert jnp.allclose(out, ref, atol=1e-5, rtol=1e-5), float(jnp.max(jnp.abs(out - ref)))
    print("KERNEL_OK")
</pallas_src>

<mosaic_0001>
module attributes {stable_mosaic.version = 11 : i64} {
  func.func @kernel(%arg0: i32, %arg1: memref<1x17x16xf32, #tpu.memory_space<vmem>>, %arg2: memref<16x128xf32, #tpu.memory_space<vmem>>, %arg3: memref<16x128xf32, #tpu.memory_space<vmem>>, %arg4: memref<1x128xf32, #tpu.memory_space<vmem>>, %arg5: memref<128x128xf32, #tpu.memory_space<vmem>>, %arg6: memref<128x128xf32, #tpu.memory_space<vmem>>, %arg7: memref<1x128xf32, #tpu.memory_space<vmem>>, %arg8: memref<128x16xf32, #tpu.memory_space<vmem>>, %arg9: memref<128x16xf32, #tpu.memory_space<vmem>>, %arg10: memref<1x16xf32, #tpu.memory_space<vmem>>, %arg11: memref<1x16x16xf32, #tpu.memory_space<vmem>>, %arg12: memref<17x128xf32, #tpu.memory_space<vmem>>) attributes {dimension_semantics = [#tpu.dimension_semantics<parallel>], iteration_bounds = array<i64: 2>, scalar_prefetch = 0 : i64, scratch_operands = 1 : i64, tpu.core_type = #tpu.core_type<tc>, window_params = [{transform_indices = @transform_0, window_bounds = array<i64: 1, 17, 16>}, {pipeline_mode = #tpu.pipeline_mode<synchronous>, transform_indices = @transform_1, window_bounds = array<i64: 16, 128>}, {pipeline_mode = #tpu.pipeline_mode<synchronous>, transform_indices = @transform_2, window_bounds = array<i64: 16, 128>}, {pipeline_mode = #tpu.pipeline_mode<synchronous>, transform_indices = @transform_3, window_bounds = array<i64: 1, 128>}, {pipeline_mode = #tpu.pipeline_mode<synchronous>, transform_indices = @transform_4, window_bounds = array<i64: 128, 128>}, {pipeline_mode = #tpu.pipeline_mode<synchronous>, transform_indices = @transform_5, window_bounds = array<i64: 128, 128>}, {pipeline_mode = #tpu.pipeline_mode<synchronous>, transform_indices = @transform_6, window_bounds = array<i64: 1, 128>}, {pipeline_mode = #tpu.pipeline_mode<synchronous>, transform_indices = @transform_7, window_bounds = array<i64: 128, 16>}, {pipeline_mode = #tpu.pipeline_mode<synchronous>, transform_indices = @transform_8, window_bounds = array<i64: 128, 16>}, {pipeline_mode = #tpu.pipeline_mode<synchronous>, transform_indices = @transform_9, window_bounds = array<i64: 1, 16>}, {transform_indices = @transform_10, window_bounds = array<i64: 1, 16, 16>}]} {
    %cst = arith.constant 0.000000e+00 : f32
    %0 = vector.broadcast %cst : f32 to vector<17x128xf32>
    %c0 = arith.constant 0 : index
    %c0_0 = arith.constant 0 : index
    %1 = vector.load %arg12[%c0, %c0_0] : memref<17x128xf32, #tpu.memory_space<vmem>>, vector<17x128xf32>
    tpu.vector_store %arg12[%c0, %c0_0], %0 {strides = array<i32>} : memref<17x128xf32, #tpu.memory_space<vmem>>, vector<17x128xf32>,
    %c0_1 = arith.constant 0 : index
    %c0_2 = arith.constant 0 : index
    %c0_3 = arith.constant 0 : index
    %2 = vector.load %arg1[%c0_1, %c0_2, %c0_3] : memref<1x17x16xf32, #tpu.memory_space<vmem>>, vector<1x17x16xf32>
    %3 = vector.shape_cast %2 : vector<1x17x16xf32> to vector<17x16xf32>
    %4 = vector.extract_strided_slice %3 {offsets = [0, 0], sizes = [16, 16], strides = [1, 1]} : vector<17x16xf32> to vector<16x16xf32>
    %c0_4 = arith.constant 0 : index
    %c0_5 = arith.constant 0 : index
    %5 = vector.load %arg2[%c0_4, %c0_5] : memref<16x128xf32, #tpu.memory_space<vmem>>, vector<16x128xf32>
    %cst_6 = arith.constant dense<0.000000e+00> : vector<16x128xf32>
    %6 = tpu.matmul %4, %5, %cst_6 {dimension_numbers = #tpu.dot_dimension_numbers<[1], [0], [0], [1], [0, 0, 1, 1], [], []>} : vector<16x16xf32>, vector<16x128xf32>, vector<16x128xf32> -> vector<16x128xf32>
    %7 = vector.extract_strided_slice %3 {offsets = [1, 0], sizes = [16, 16], strides = [1, 1]} : vector<17x16xf32> to vector<16x16xf32>
    %c0_7 = arith.constant 0 : index
    %c0_8 = arith.constant 0 : index
    %8 = vector.load %arg3[%c0_7, %c0_8] : memref<16x128xf32, #tpu.memory_space<vmem>>, vector<16x128xf32>
    %cst_9 = arith.constant dense<0.000000e+00> : vector<16x128xf32>
    %9 = tpu.matmul %7, %8, %cst_9 {dimension_numbers = #tpu.dot_dimension_numbers<[1], [0], [0], [1], [0, 0, 1, 1], [], []>} : vector<16x16xf32>, vector<16x128xf32>, vector<16x128xf32> -> vector<16x128xf32>
    %10 = arith.addf %6, %9 : vector<16x128xf32>
    %c0_10 = arith.constant 0 : index
    %c0_11 = arith.constant 0 : index
    %11 = vector.load %arg4[%c0_10, %c0_11] : memref<1x128xf32, #tpu.memory_space<vmem>>, vector<1x128xf32>
    %12 = vector.broadcast %11 : vector<1x128xf32> to vector<16x128xf32>
    %13 = arith.addf %10, %12 : vector<16x128xf32>
    %cst_12 = arith.constant 0.000000e+00 : f32
    %14 = vector.broadcast %cst_12 : f32 to vector<16x128xf32>
    %15 = arith.maximumf %13, %14 : vector<16x128xf32>
    %c1 = arith.constant 1 : index
    %c0_13 = arith.constant 0 : index
    %16 = vector.load %arg12[%c1, %c0_13] : memref<17x128xf32, #tpu.memory_space<vmem>>, vector<16x128xf32>
    tpu.vector_store %arg12[%c1, %c0_13], %15 {strides = array<i32>} : memref<17x128xf32, #tpu.memory_space<vmem>>, vector<16x128xf32>,
    %c0_14 = arith.constant 0 : index
    %c0_15 = arith.constant 0 : index
    %17 = vector.load %arg12[%c0_14, %c0_15] : memref<17x128xf32, #tpu.memory_space<vmem>>, vector<17x128xf32>
    %18 = vector.extract_strided_slice %17 {offsets = [0, 0], sizes = [16, 128], strides = [1, 1]} : vector<17x128xf32> to vector<16x128xf32>
    %c0_16 = arith.constant 0 : index
    %c0_17 = arith.constant 0 : index
    %19 = vector.load %arg5[%c0_16, %c0_17] : memref<128x128xf32, #tpu.memory_space<vmem>>, vector<128x128xf32>
    %cst_18 = arith.constant dense<0.000000e+00> : vector<16x128xf32>
    %20 = tpu.matmul %18, %19, %cst_18 {dimension_numbers = #tpu.dot_dimension_numbers<[1], [0], [0], [1], [0, 0, 1, 1], [], []>} : vector<16x128xf32>, vector<128x128xf32>, vector<16x128xf32> -> vector<16x128xf32>
    %21 = vector.extract_strided_slice %17 {offsets = [1, 0], sizes = [16, 128], strides = [1, 1]} : vector<17x128xf32> to vector<16x128xf32>
    %c0_19 = arith.constant 0 : index
    %c0_20 = arith.constant 0 : index
    %22 = vector.load %arg6[%c0_19, %c0_20] : memref<128x128xf32, #tpu.memory_space<vmem>>, vector<128x128xf32>
    %cst_21 = arith.constant dense<0.000000e+00> : vector<16x128xf32>
    %23 = tpu.matmul %21, %22, %cst_21 {dimension_numbers = #tpu.dot_dimension_numbers<[1], [0], [0], [1], [0, 0, 1, 1], [], []>} : vector<16x128xf32>, vector<128x128xf32>, vector<16x128xf32> -> vector<16x128xf32>
    %24 = arith.addf %20, %23 : vector<16x128xf32>
    %c0_22 = arith.constant 0 : index
    %c0_23 = arith.constant 0 : index
    %25 = vector.load %arg7[%c0_22, %c0_23] : memref<1x128xf32, #tpu.memory_space<vmem>>, vector<1x128xf32>
    %26 = vector.broadcast %25 : vector<1x128xf32> to vector<16x128xf32>
    %27 = arith.addf %24, %26 : vector<16x128xf32>
    %cst_24 = arith.constant 0.000000e+00 : f32
    %28 = vector.broadcast %cst_24 : f32 to vector<16x128xf32>
    %29 = arith.maximumf %27, %28 : vector<16x128xf32>
    %c1_25 = arith.constant 1 : index
    %c0_26 = arith.constant 0 : index
    %30 = vector.load %arg12[%c1_25, %c0_26] : memref<17x128xf32, #tpu.memory_space<vmem>>, vector<16x128xf32>
    tpu.vector_store %arg12[%c1_25, %c0_26], %29 {strides = array<i32>} : memref<17x128xf32, #tpu.memory_space<vmem>>, vector<16x128xf32>,
    %c0_27 = arith.constant 0 : index
    %c0_28 = arith.constant 0 : index
    %31 = vector.load %arg12[%c0_27, %c0_28] : memref<17x128xf32, #tpu.memory_space<vmem>>, vector<17x128xf32>
    %32 = vector.extract_strided_slice %31 {offsets = [0, 0], sizes = [16, 128], strides = [1, 1]} : vector<17x128xf32> to vector<16x128xf32>
    %c0_29 = arith.constant 0 : index
    %c0_30 = arith.constant 0 : index
    %33 = vector.load %arg8[%c0_29, %c0_30] : memref<128x16xf32, #tpu.memory_space<vmem>>, vector<128x16xf32>
    %cst_31 = arith.constant dense<0.000000e+00> : vector<16x16xf32>
    %34 = tpu.matmul %32, %33, %cst_31 {dimension_numbers = #tpu.dot_dimension_numbers<[1], [0], [0], [1], [0, 0, 1, 1], [], []>} : vector<16x128xf32>, vector<128x16xf32>, vector<16x16xf32> -> vector<16x16xf32>
    %35 = vector.extract_strided_slice %31 {offsets = [1, 0], sizes = [16, 128], strides = [1, 1]} : vector<17x128xf32> to vector<16x128xf32>
    %c0_32 = arith.constant 0 : index
    %c0_33 = arith.constant 0 : index
    %36 = vector.load %arg9[%c0_32, %c0_33] : memref<128x16xf32, #tpu.memory_space<vmem>>, vector<128x16xf32>
    %cst_34 = arith.constant dense<0.000000e+00> : vector<16x16xf32>
    %37 = tpu.matmul %35, %36, %cst_34 {dimension_numbers = #tpu.dot_dimension_numbers<[1], [0], [0], [1], [0, 0, 1, 1], [], []>} : vector<16x128xf32>, vector<128x16xf32>, vector<16x16xf32> -> vector<16x16xf32>
    %38 = arith.addf %34, %37 : vector<16x16xf32>
    %c0_35 = arith.constant 0 : index
    %c0_36 = arith.constant 0 : index
    %39 = vector.load %arg10[%c0_35, %c0_36] : memref<1x16xf32, #tpu.memory_space<vmem>>, vector<1x16xf32>
    %40 = vector.broadcast %39 : vector<1x16xf32> to vector<16x16xf32>
    %41 = arith.addf %38, %40 : vector<16x16xf32>
    %42 = arith.negf %41 : vector<16x16xf32>
    %43 = math.exp %42 : vector<16x16xf32>
    %cst_37 = arith.constant 1.000000e+00 : f32
    %44 = vector.broadcast %cst_37 : f32 to vector<16x16xf32>
    %45 = arith.addf %44, %43 : vector<16x16xf32>
    %46 = arith.divf %44, %45 : vector<16x16xf32>
    %c0_38 = arith.constant 0 : index
    %c0_39 = arith.constant 0 : index
    %c0_40 = arith.constant 0 : index
    %47 = vector.load %arg11[%c0_38, %c0_39, %c0_40] : memref<1x16x16xf32, #tpu.memory_space<vmem>>, vector<1x16x16xf32>
    %48 = vector.shape_cast %47 : vector<1x16x16xf32> to vector<16x16xf32>
    %49 = vector.shape_cast %46 : vector<16x16xf32> to vector<1x16x16xf32>
    tpu.vector_store %arg11[%c0_38, %c0_39, %c0_40], %49 {strides = array<i32>} : memref<1x16x16xf32, #tpu.memory_space<vmem>>, vector<1x16x16xf32>,
    return
  }
  func.func @transform_0(%arg0: i32) -> (i32, i32, i32) {
    %c0_i32 = arith.constant 0 : i32
    %c0_i32_0 = arith.constant 0 : i32
    %c0_i32_1 = arith.constant 0 : i32
    return %arg0, %c0_i32, %c0_i32_0 : i32, i32, i32
  }
  func.func @transform_1(%arg0: i32) -> (i32, i32) {
    %c0_i32 = arith.constant 0 : i32
    %c0_i32_0 = arith.constant 0 : i32
    %c0_i32_1 = arith.constant 0 : i32
    return %c0_i32, %c0_i32_0 : i32, i32
  }
  func.func @transform_2(%arg0: i32) -> (i32, i32) {
    %c0_i32 = arith.constant 0 : i32
    %c0_i32_0 = arith.constant 0 : i32
    %c0_i32_1 = arith.constant 0 : i32
    return %c0_i32, %c0_i32_0 : i32, i32
  }
  func.func @transform_3(%arg0: i32) -> (i32, i32) {
    %c0_i32 = arith.constant 0 : i32
    %c0_i32_0 = arith.constant 0 : i32
    %c0_i32_1 = arith.constant 0 : i32
    return %c0_i32, %c0_i32_0 : i32, i32
  }
  func.func @transform_4(%arg0: i32) -> (i32, i32) {
    %c0_i32 = arith.constant 0 : i32
    %c0_i32_0 = arith.constant 0 : i32
    %c0_i32_1 = arith.constant 0 : i32
    return %c0_i32, %c0_i32_0 : i32, i32
  }
  func.func @transform_5(%arg0: i32) -> (i32, i32) {
    %c0_i32 = arith.constant 0 : i32
    %c0_i32_0 = arith.constant 0 : i32
    %c0_i32_1 = arith.constant 0 : i32
    return %c0_i32, %c0_i32_0 : i32, i32
  }
  func.func @transform_6(%arg0: i32) -> (i32, i32) {
    %c0_i32 = arith.constant 0 : i32
    %c0_i32_0 = arith.constant 0 : i32
    %c0_i32_1 = arith.constant 0 : i32
    return %c0_i32, %c0_i32_0 : i32, i32
  }
  func.func @transform_7(%arg0: i32) -> (i32, i32) {
    %c0_i32 = arith.constant 0 : i32
    %c0_i32_0 = arith.constant 0 : i32
    %c0_i32_1 = arith.constant 0 : i32
    return %c0_i32, %c0_i32_0 : i32, i32
  }
  func.func @transform_8(%arg0: i32) -> (i32, i32) {
    %c0_i32 = arith.constant 0 : i32
    %c0_i32_0 = arith.constant 0 : i32
    %c0_i32_1 = arith.constant 0 : i32
    return %c0_i32, %c0_i32_0 : i32, i32
  }
  func.func @transform_9(%arg0: i32) -> (i32, i32) {
    %c0_i32 = arith.constant 0 : i32
    %c0_i32_0 = arith.constant 0 : i32
    %c0_i32_1 = arith.constant 0 : i32
    return %c0_i32, %c0_i32_0 : i32, i32
  }
  func.func @transform_10(%arg0: i32) -> (i32, i32, i32) {
    %c0_i32 = arith.constant 0 : i32
    %c0_i32_0 = arith.constant 0 : i32
    %c0_i32_1 = arith.constant 0 : i32
    return %arg0, %c0_i32, %c0_i32_0 : i32, i32, i32
  }
}

</mosaic_0001>

<llo_original>
// kernel: tpu_custom_call.1
$region0: #{tpu_custom_call.1}
  #allocation0 [shape = 'u32[]', space=smem, size = 0x4, offset = 0x4, fixed_abs, tag = 'smem constant byte address 0x4 - core index']
  #allocation1 [shape = 'u32[72,128]{1,0:T(1,128)}', space=vmem, size = 0x9000, scoped, tag = 'internal scratch']
  #allocation2 [shape = 'f32[17,128]{1,0:T(8,128)}', space=vmem, size = 0x3000, scoped, tag = 'scratch operand']
  %s0 = inlined_call_operand.vmem [shape: f32[2,17,16], index: 0, kind: input, shape index: {}]
  %s1 = inlined_call_operand.vmem [shape: f32[16,128], index: 1, kind: input, shape index: {}]
  %s2 = inlined_call_operand.vmem [shape: f32[16,128], index: 2, kind: input, shape index: {}]
  %s3 = inlined_call_operand.vmem [shape: f32[1,128], index: 3, kind: input, shape index: {}]
  %s4 = inlined_call_operand.vmem [shape: f32[128,128], index: 4, kind: input, shape index: {}]
  %s5 = inlined_call_operand.vmem [shape: f32[128,128], index: 5, kind: input, shape index: {}]
  %s6 = inlined_call_operand.vmem [shape: f32[1,128], index: 6, kind: input, shape index: {}]
  %s7 = inlined_call_operand.vmem [shape: f32[128,16], index: 7, kind: input, shape index: {}]
  %s8 = inlined_call_operand.vmem [shape: f32[128,16], index: 8, kind: input, shape index: {}]
  %s9 = inlined_call_operand.vmem [shape: f32[1,16], index: 9, kind: input, shape index: {}]
  %s10 = inlined_call_operand.hbm [shape: f32[2,16,16], index: 10, kind: output, shape index: {}]
  %s11 = sld [smem:[#allocation0]]
  $region73: #{tpu_custom_call.1} parent=0
    _
  %s13 = ssub.s32 1, %s11
  %s14 = scalar_select 0, %s13, %s11
  $region1: #{tpu_custom_call.1} parent=0
    #allocation3 [shape = 'u8[16384]{0}', space=vmem, size = 0x4000, scoped, tag = 'output window, operand 0']
    #allocation4 [shape = 's32[2]{0}', space=sflag, size = 0x8, scoped, tag = 'scoped memory for tpu_custom_call.1']
    %15 = vsyncpa [#allocation4], 0
    %s16 = scalar_lea.sflag [#allocation4], 1
    %17 = vsyncpa %s16, 0
    loop: start=0, step=1, limit=4
    $region2: #{tpu_custom_call.1} parent=1 // loop_pre_header
      _
    $region3: #{tpu_custom_call.1} parent=1 // loop_header
      %s19 = sphi 0, %s23
      %p20 = scmp.ge.s32.totalorder %s19, 4
      %s29 = sphi 0, %s31
      %s32 = sphi 0, %s29
      %s33 = sphi 0, %s32
      %s49 = sphi 0, %s33
      %s53 = sphi 0, %s53
      %s55 = sphi 0, %s53
      %s56 = sphi 0, %s55
      %s70 = sphi 0, %s56
      %s74 = sphi 0, %s74
      %s76 = sphi 0, %s74
      %s77 = sphi 0, %s76
      %s91 = sphi 0, %s77
      %s95 = sphi 0, %s95
      %s97 = sphi 0, %s95
      %s98 = sphi 0, %s97
      %s112 = sphi 0, %s98
      %s116 = sphi 0, %s116
      %s118 = sphi 0, %s116
      %s119 = sphi 0, %s118
      %s133 = sphi 0, %s119
      %s137 = sphi 0, %s137
      %s139 = sphi 0, %s137
      %s140 = sphi 0, %s139
      %s154 = sphi 0, %s140
      %s158 = sphi 0, %s158
      %s160 = sphi 0, %s158
      %s161 = sphi 0, %s160
      %s175 = sphi 0, %s161
      %s179 = sphi 0, %s179
      %s181 = sphi 0, %s179
      %s182 = sphi 0, %s181
      %s196 = sphi 0, %s182
      %s200 = sphi 0, %s200
      %s202 = sphi 0, %s200
      %s203 = sphi 0, %s202
      %s217 = sphi 0, %s203
      %s221 = sphi 0, %s221
      %s223 = sphi 0, %s221
      %s224 = sphi 0, %s223
      %s238 = sphi 0, %s224
      %s244 = sphi 0, %s246
      %s247 = sphi 0, %s244
      %s248 = sphi 0, %s247
      %s264 = sphi 0, %s248
    $region4: #{tpu_custom_call.1} parent=1 // loop_header_branch
      %22 = sbr.rel (%p20) target = $region8
    $region5: #{tpu_custom_call.1} parent=1 // loop_body
      %s24 = ssub.s32 %s19, 1
      %s25 = ssub.s32 %s19, 2
      %s26 = sadd.s32 %s19, 1
      %s27 = ssub.s32 %s19, %s26
      %p28 = scmp.eq.s32.totalorder %s27, 0
      %s30 = sadd.s32 %s29, 1
      %s31 = scalar_select %p28, %s29, %s30
      %p34 = pneg %p28
      %p35 = scmp.eq.s32.totalorder %s19, 1
      %p36 = por %p34, %p35
      %p37 = scmp.ne.s32.totalorder %s29, %s32
      %p38 = scmp.eq.s32.totalorder %s19, 0
      %p39 = por %p37, %p38
      %p40 = scmp.ne.s32.totalorder %s29, %s32
      %p41 = scmp.eq.s32.totalorder %s24, 1
      %p42 = por %p40, %p41
      %p43 = scmp.ne.s32.totalorder %s32, %s33
      %p44 = scmp.eq.s32.totalorder %s24, 0
      %p45 = por %p43, %p44
      %p46 = scmp.ne.s32.totalorder %s32, %s33
      %p47 = scmp.eq.s32.totalorder %s25, 1
      %p48 = por %p46, %p47
      %p50 = scmp.ne.s32.totalorder %s33, %s49
      %p51 = scmp.eq.s32.totalorder %s25, 0
      %p52 = por %p50, %p51
      %s54 = sadd.s32 %s53, 1
      %p57 = scmp.eq.s32.totalorder %s19, 1
      %p58 = scmp.ne.s32.totalorder %s53, %s55
      %p59 = scmp.eq.s32.totalorder %s19, 0
      %p60 = por %p58, %p59
      %p61 = scmp.ne.s32.totalorder %s53, %s55
      %p62 = scmp.eq.s32.totalorder %s24, 1
      %p63 = por %p61, %p62
      %p64 = scmp.ne.s32.totalorder %s55, %s56
      %p65 = scmp.eq.s32.totalorder %s24, 0
      %p66 = por %p64, %p65
      %p67 = scmp.ne.s32.totalorder %s55, %s56
      %p68 = scmp.eq.s32.totalorder %s25, 1
      %p69 = por %p67, %p68
      %p71 = scmp.ne.s32.totalorder %s56, %s70
      %p72 = scmp.eq.s32.totalorder %s25, 0
      %p73 = por %p71, %p72
      %s75 = sadd.s32 %s74, 1
      %p78 = scmp.eq.s32.totalorder %s19, 1
      %p79 = scmp.ne.s32.totalorder %s74, %s76
      %p80 = scmp.eq.s32.totalorder %s19, 0
      %p81 = por %p79, %p80
      %p82 = scmp.ne.s32.totalorder %s74, %s76
      %p83 = scmp.eq.s32.totalorder %s24, 1
      %p84 = por %p82, %p83
      %p85 = scmp.ne.s32.totalorder %s76, %s77
      %p86 = scmp.eq.s32.totalorder %s24, 0
      %p87 = por %p85, %p86
      %p88 = scmp.ne.s32.totalorder %s76, %s77
      %p89 = scmp.eq.s32.totalorder %s25, 1
      %p90 = por %p88, %p89
      %p92 = scmp.ne.s32.totalorder %s77, %s91
      %p93 = scmp.eq.s32.totalorder %s25, 0
      %p94 = por %p92, %p93
      %s96 = sadd.s32 %s95, 1
      %p99 = scmp.eq.s32.totalorder %s19, 1
      %p100 = scmp.ne.s32.totalorder %s95, %s97
      %p101 = scmp.eq.s32.totalorder %s19, 0
      %p102 = por %p100, %p101
      %p103 = scmp.ne.s32.totalorder %s95, %s97
      %p104 = scmp.eq.s32.totalorder %s24, 1
      %p105 = por %p103, %p104
      %p106 = scmp.ne.s32.totalorder %s97, %s98
      %p107 = scmp.eq.s32.totalorder %s24, 0
      %p108 = por %p106, %p107
      %p109 = scmp.ne.s32.totalorder %s97, %s98
      %p110 = scmp.eq.s32.totalorder %s25, 1
      %p111 = por %p109, %p110
      %p113 = scmp.ne.s32.totalorder %s98, %s112
      %p114 = scmp.eq.s32.totalorder %s25, 0
      %p115 = por %p113, %p114
      %s117 = sadd.s32 %s116, 1
      %p120 = scmp.eq.s32.totalorder %s19, 1
      %p121 = scmp.ne.s32.totalorder %s116, %s118
      %p122 = scmp.eq.s32.totalorder %s19, 0
      %p123 = por %p121, %p122
      %p124 = scmp.ne.s32.totalorder %s116, %s118
      %p125 = scmp.eq.s32.totalorder %s24, 1
      %p126 = por %p124, %p125
      %p127 = scmp.ne.s32.totalorder %s118, %s119
      %p128 = scmp.eq.s32.totalorder %s24, 0
      %p129 = por %p127, %p128
      %p130 = scmp.ne.s32.totalorder %s118, %s119
      %p131 = scmp.eq.s32.totalorder %s25, 1
      %p132 = por %p130, %p131
      %p134 = scmp.ne.s32.totalorder %s119, %s133
      %p135 = scmp.eq.s32.totalorder %s25, 0
      %p136 = por %p134, %p135
      %s138 = sadd.s32 %s137, 1
      %p141 = scmp.eq.s32.totalorder %s19, 1
      %p142 = scmp.ne.s32.totalorder %s137, %s139
      %p143 = scmp.eq.s32.totalorder %s19, 0
      %p144 = por %p142, %p143
      %p145 = scmp.ne.s32.totalorder %s137, %s139
      %p146 = scmp.eq.s32.totalorder %s24, 1
      %p147 = por %p145, %p146
      %p148 = scmp.ne.s32.totalorder %s139, %s140
      %p149 = scmp.eq.s32.totalorder %s24, 0
      %p150 = por %p148, %p149
      %p151 = scmp.ne.s32.totalorder %s139, %s140
      %p152 = scmp.eq.s32.totalorder %s25, 1
      %p153 = por %p151, %p152
      %p155 = scmp.ne.s32.totalorder %s140, %s154
      %p156 = scmp.eq.s32.totalorder %s25, 0
      %p157 = por %p155, %p156
      %s159 = sadd.s32 %s158, 1
      %p162 = scmp.eq.s32.totalorder %s19, 1
      %p163 = scmp.ne.s32.totalorder %s158, %s160
      %p164 = scmp.eq.s32.totalorder %s19, 0
      %p165 = por %p163, %p164
      %p166 = scmp.ne.s32.totalorder %s158, %s160
      %p167 = scmp.eq.s32.totalorder %s24, 1
      %p168 = por %p166, %p167
      %p169 = scmp.ne.s32.totalorder %s160, %s161
      %p170 = scmp.eq.s32.totalorder %s24, 0
      %p171 = por %p169, %p170
      %p172 = scmp.ne.s32.totalorder %s160, %s161
      %p173 = scmp.eq.s32.totalorder %s25, 1
      %p174 = por %p172, %p173
      %p176 = scmp.ne.s32.totalorder %s161, %s175
      %p177 = scmp.eq.s32.totalorder %s25, 0
      %p178 = por %p176, %p177
      %s180 = sadd.s32 %s179, 1
      %p183 = scmp.eq.s32.totalorder %s19, 1
      %p184 = scmp.ne.s32.totalorder %s179, %s181
      %p185 = scmp.eq.s32.totalorder %s19, 0
      %p186 = por %p184, %p185
      %p187 = scmp.ne.s32.totalorder %s179, %s181
      %p188 = scmp.eq.s32.totalorder %s24, 1
      %p189 = por %p187, %p188
      %p190 = scmp.ne.s32.totalorder %s181, %s182
      %p191 = scmp.eq.s32.totalorder %s24, 0
      %p192 = por %p190, %p191
      %p193 = scmp.ne.s32.totalorder %s181, %s182
      %p194 = scmp.eq.s32.totalorder %s25, 1
      %p195 = por %p193, %p194
      %p197 = scmp.ne.s32.totalorder %s182, %s196
      %p198 = scmp.eq.s32.totalorder %s25, 0
      %p199 = por %p197, %p198
      %s201 = sadd.s32 %s200, 1
      %p204 = scmp.eq.s32.totalorder %s19, 1
      %p205 = scmp.ne.s32.totalorder %s200, %s202
      %p206 = scmp.eq.s32.totalorder %s19, 0
      %p207 = por %p205, %p206
      %p208 = scmp.ne.s32.totalorder %s200, %s202
      %p209 = scmp.eq.s32.totalorder %s24, 1
      %p210 = por %p208, %p209
      %p211 = scmp.ne.s32.totalorder %s202, %s203
      %p212 = scmp.eq.s32.totalorder %s24, 0
      %p213 = por %p211, %p212
      %p214 = scmp.ne.s32.totalorder %s202, %s203
      %p215 = scmp.eq.s32.totalorder %s25, 1
      %p216 = por %p214, %p215
      %p218 = scmp.ne.s32.totalorder %s203, %s217
      %p219 = scmp.eq.s32.totalorder %s25, 0
      %p220 = por %p218, %p219
      %s222 = sadd.s32 %s221, 1
      %p225 = scmp.eq.s32.totalorder %s19, 1
      %p226 = scmp.ne.s32.totalorder %s221, %s223
      %p227 = scmp.eq.s32.totalorder %s19, 0
      %p228 = por %p226, %p227
      %p229 = scmp.ne.s32.totalorder %s221, %s223
      %p230 = scmp.eq.s32.totalorder %s24, 1
      %p231 = por %p229, %p230
      %p232 = scmp.ne.s32.totalorder %s223, %s224
      %p233 = scmp.eq.s32.totalorder %s24, 0
      %p234 = por %p232, %p233
      %p235 = scmp.ne.s32.totalorder %s223, %s224
      %p236 = scmp.eq.s32.totalorder %s25, 1
      %p237 = por %p235, %p236
      %p239 = scmp.ne.s32.totalorder %s224, %s238
      %p240 = scmp.eq.s32.totalorder %s25, 0
      %p241 = por %p239, %p240
      %s242 = ssub.s32 %s19, %s26
      %p243 = scmp.eq.s32.totalorder %s242, 0
      %s245 = sadd.s32 %s244, 1
      %s246 = scalar_select %p243, %s244, %s245
      %p249 = pneg %p243
      %p250 = scmp.eq.s32.totalorder %s19, 1
      %p251 = por %p249, %p250
      %p252 = scmp.ne.s32.totalorder %s244, %s247
      %p253 = scmp.eq.s32.totalorder %s19, 0
      %p254 = por %p252, %p253
      %p255 = scmp.ne.s32.totalorder %s244, %s247
      %p256 = scmp.eq.s32.totalorder %s24, 1
      %p257 = por %p255, %p256
      %p258 = scmp.ne.s32.totalorder %s247, %s248
      %p259 = scmp.eq.s32.totalorder %s24, 0
      %p260 = por %p258, %p259
      %p261 = scmp.ne.s32.totalorder %s247, %s248
      %p262 = scmp.eq.s32.totalorder %s25, 1
      %p263 = por %p261, %p262
      %p265 = scmp.ne.s32.totalorder %s248, %s264
      %p266 = scmp.eq.s32.totalorder %s25, 0
      %p267 = por %p265, %p266
      %p268 = scmp.le.s32.totalorder 1, %s19
      %p269 = scmp.lt.s32.totalorder %s19, 3
      %p270 = pnand %p268, %p269
      %p271 = pneg %p270
      // Predicated region
      $region9: #{tpu_custom_call.1} parent=5 // pred_check
        _
      $region10: #{tpu_custom_call.1} parent=5 // pred_check_branch
        %273 = sbr.rel (%p270) target = $region12
      $region11: #{tpu_custom_call.1} parent=5 // pred_region
        %s274 = ssub.s32 %s19, 1
        // Predicated region
        $region13: #{tpu_custom_call.1} parent=11 // pred_check
          %p275 = pneg %p66
        $region14: #{tpu_custom_call.1} parent=11 // pred_check_branch
          %277 = sbr.rel (%p275) target = $region16
        $region15: #{tpu_custom_call.1} parent=11 // pred_region
          _
        $region16: #{tpu_custom_call.1} parent=11 // pred_fallthru
          _
        // Predicated region
        $region17: #{tpu_custom_call.1} parent=11 // pred_check
          %p278 = pneg %p87
        $region18: #{tpu_custom_call.1} parent=11 // pred_check_branch
          %280 = sbr.rel (%p278) target = $region20
        $region19: #{tpu_custom_call.1} parent=11 // pred_region
          _
        $region20: #{tpu_custom_call.1} parent=11 // pred_fallthru
          _
        // Predicated region
        $region21: #{tpu_custom_call.1} parent=11 // pred_check
          %p281 = pneg %p108
        $region22: #{tpu_custom_call.1} parent=11 // pred_check_branch
          %283 = sbr.rel (%p281) target = $region24
        $region23: #{tpu_custom_call.1} parent=11 // pred_region
          _
        $region24: #{tpu_custom_call.1} parent=11 // pred_fallthru
          _
        // Predicated region
        $region25: #{tpu_custom_call.1} parent=11 // pred_check
          %p284 = pneg %p129
        $region26: #{tpu_custom_call.1} parent=11 // pred_check_branch
          %286 = sbr.rel (%p284) target = $region28
        $region27: #{tpu_custom_call.1} parent=11 // pred_region
          _
        $region28: #{tpu_custom_call.1} parent=11 // pred_fallthru
          _
        // Predicated region
        $region29: #{tpu_custom_call.1} parent=11 // pred_check
          %p287 = pneg %p150
        $region30: #{tpu_custom_call.1} parent=11 // pred_check_branch
          %289 = sbr.rel (%p287) target = $region32
        $region31: #{tpu_custom_call.1} parent=11 // pred_region
          _
        $region32: #{tpu_custom_call.1} parent=11 // pred_fallthru
          _
        // Predicated region
        $region33: #{tpu_custom_call.1} parent=11 // pred_check
          %p290 = pneg %p171
        $region34: #{tpu_custom_call.1} parent=11 // pred_check_branch
          %292 = sbr.rel (%p290) target = $region36
        $region35: #{tpu_custom_call.1} parent=11 // pred_region
          _
        $region36: #{tpu_custom_call.1} parent=11 // pred_fallthru
          _
        // Predicated region
        $region37: #{tpu_custom_call.1} parent=11 // pred_check
          %p293 = pneg %p192
        $region38: #{tpu_custom_call.1} parent=11 // pred_check_branch
          %295 = sbr.rel (%p293) target = $region40
        $region39: #{tpu_custom_call.1} parent=11 // pred_region
          _
        $region40: #{tpu_custom_call.1} parent=11 // pred_fallthru
          _
        // Predicated region
        $region41: #{tpu_custom_call.1} parent=11 // pred_check
          %p296 = pneg %p213
        $region42: #{tpu_custom_call.1} parent=11 // pred_check_branch
          %298 = sbr.rel (%p296) target = $region44
        $region43: #{tpu_custom_call.1} parent=11 // pred_region
          _
        $region44: #{tpu_custom_call.1} parent=11 // pred_fallthru
          _
        // Predicated region
        $region45: #{tpu_custom_call.1} parent=11 // pred_check
          %p299 = pneg %p234
        $region46: #{tpu_custom_call.1} parent=11 // pred_check_branch
          %301 = sbr.rel (%p299) target = $region48
        $region47: #{tpu_custom_call.1} parent=11 // pred_region
          _
        $region48: #{tpu_custom_call.1} parent=11 // pred_fallthru
          _
      $region12: #{tpu_custom_call.1} parent=5 // pred_fallthru
        _
      %p302 = scmp.lt.s32.totalorder %s19, 2
      // Predicated region
      $region49: #{tpu_custom_call.1} parent=5 // pred_check
        %p303 = pneg %p302
      $region50: #{tpu_custom_call.1} parent=5 // pred_check_branch
        %305 = sbr.rel (%p303) target = $region52
      $region51: #{tpu_custom_call.1} parent=5 // pred_region
        // Predicated region
        $region53: #{tpu_custom_call.1} parent=51 // pred_check
          %p306 = pneg %p39
        $region54: #{tpu_custom_call.1} parent=51 // pred_check_branch
          %308 = sbr.rel (%p306) target = $region56
        $region55: #{tpu_custom_call.1} parent=51 // pred_region
          %p309 = scmp.lt.s32.totalorder %s19, 1
          %s310 = scalar_select %p309, %s19, 1
          %s311 = smul.addr %s310, 3
          %s312 = smul.addr %s311, 8
          %s313 = scalar_lea.vmem %s0, %s312
        $region56: #{tpu_custom_call.1} parent=51 // pred_fallthru
          _
      $region52: #{tpu_custom_call.1} parent=5 // pred_fallthru
        _
      %p314 = scmp.le.s32.totalorder 1, %s19
      %p315 = scmp.lt.s32.totalorder %s19, 3
      %p316 = pnand %p314, %p315
      %p317 = pneg %p316
      // Predicated region
      $region57: #{tpu_custom_call.1} parent=5 // pred_check
        _
      $region58: #{tpu_custom_call.1} parent=5 // pred_check_branch
        %319 = sbr.rel (%p316) target = $region60
      $region59: #{tpu_custom_call.1} parent=5 // pred_region
        %s320 = ssub.s32 %s19, 1
        %p321 = scmp.lt.s32.totalorder %s24, 1
        %s322 = scalar_select %p321, %s24, 1
        %s323 = smul.addr %s322, 3
        %s324 = smul.addr %s323, 8
        %s325 = scalar_lea.vmem %s0, %s324
        %p326 = pneg %p45
        %p327 = pneg %p42
        %p328 = pneg %p66
        %p329 = pneg %p63
        %p330 = pneg %p87
        %p331 = pneg %p84
        %p332 = pneg %p108
        %p333 = pneg %p105
        %p334 = pneg %p129
        %p335 = pneg %p126
        %p336 = pneg %p150
        %p337 = pneg %p147
        %p338 = pneg %p171
        %p339 = pneg %p168
        %p340 = pneg %p192
        %p341 = pneg %p189
        %p342 = pneg %p213
        %p343 = pneg %p210
        %p344 = pneg %p234
        %p345 = pneg %p231
        %p346 = pneg %p260
        %p347 = pneg %p257
        %s348 = sand.u32 %s247, 1
        %s349 = scalar_lea.sflag [#allocation4], %s348
        %s350 = sand.u32 %s247, 1
        %s351 = smul.addr %s350, 16
        %s352 = scalar_lea.vmem [#allocation3], %s351
        %p353 = scmp.lt.s32.totalorder %s24, 1
        %s354 = scalar_select %p353, %s24, 1
        %s355 = smul.addr %s354, 3
        %s356 = smul.addr %s355, 8
        %s357 = scalar_lea.vmem %s0, %s356
        %358 = vst [vmem:[#allocation2] sm:$0xff] 0.0
        %359 = vst [vmem:[#allocation2 + $0x8] sm:$0xff] 0.0
        %360 = vst [vmem:[#allocation2 + $0x10] sm:$0x1] 0.0
        %v361 = vld [vmem:[%s357] sm:$0xff]
        %v362 = vld [vmem:[%s357 + $0x8] sm:$0xff]
        %v363 = vld [vmem:[%s357 + $0x10] sm:$0x1]
        %v364 = vld [vmem:[%s1] sm:$0xff]
        %v365 = vld [vmem:[%s1 + $0x8] sm:$0xff]
        %v366 = vld [vmem:[%s2] sm:$0xff]
        %v367 = vld [vmem:[%s2 + $0x8] sm:$0xff]
        %vm371 = vcmask 1046528
        %v372 = vrot.slane %v361, 1
        %v373 = vrot.slane %v362, 1
        %v374 = vsel %vm371, %v372, %v373
        %v375 = vrot.slane %v363, 1
        %v376 = vsel %vm371, %v373, %v375
        %vm377 = vcmask 130048
        %v378 = vsel %vm377, %v374, 0
        %v380 = vsel %vm377, %v376, 0
        %382 = vmatpush.msra.mxu0 0.0
        %383 = vmatpush.msra.mxu0 0.0
        %384 = vmatpush.msra.mxu0 0.0
        %385 = vmatpush.msra.mxu0 0.0
        %386 = vmatpush.msra.mxu0 0.0
        %387 = vmatpush.msra.mxu0 0.0
        %388 = vmatpush.msra.mxu0 0.0
        %389 = vmatpush.msra.mxu0 0.0
        %390 = vmatpush.msra.mxu0 0.0
        %391 = vmatpush.msra.mxu0 0.0
        %392 = vmatpush.msra.mxu0 0.0
        %393 = vmatpush.msra.mxu0 0.0
        %394 = vmatpush.msra.mxu0 0.0
        %395 = vmatpush.msra.mxu0 0.0
        %396 = vmatpush.msra.mxu0 %v367
        %397 = vmatpush.msra.mxu0 %v366
        %398 = vmatmul.f32.gmra.mxu0 %v378
        %v399 = vpop.f32.mrf.mxu0
        %v400 = vadd.f32 0.0, %v399
        %401 = vmatmul.f32.gmra.mxu0 %v380
        %v402 = vpop.f32.mrf.mxu0
        %v403 = vadd.f32 0.0, %v402
        %404 = vdwg.mxu0
        %v405 = vsel %vm377, %v361, 0
        %v407 = vsel %vm377, %v362, 0
        %409 = vmatpush.msra.mxu0 0.0
        %410 = vmatpush.msra.mxu0 0.0
        %411 = vmatpush.msra.mxu0 0.0
        %412 = vmatpush.msra.mxu0 0.0
        %413 = vmatpush.msra.mxu0 0.0
        %414 = vmatpush.msra.mxu0 0.0
        %415 = vmatpush.msra.mxu0 0.0
        %416 = vmatpush.msra.mxu0 0.0
        %417 = vmatpush.msra.mxu0 0.0
        %418 = vmatpush.msra.mxu0 0.0
        %419 = vmatpush.msra.mxu0 0.0
        %420 = vmatpush.msra.mxu0 0.0
        %421 = vmatpush.msra.mxu0 0.0
        %422 = vmatpush.msra.mxu0 0.0
        %423 = vmatpush.msra.mxu0 %v365
        %424 = vmatpush.msra.mxu0 %v364
        %425 = vmatmul.f32.gmra.mxu0 %v405
        %v426 = vpop.f32.mrf.mxu0
        %v427 = vadd.f32 %v400, %v426
        %428 = vmatmul.f32.gmra.mxu0 %v407
        %v429 = vpop.f32.mrf.mxu0
        %v430 = vadd.f32 %v403, %v429
        %431 = vdwg.mxu0
        %v432 = vld [vmem:[%s3] sm:$0x1]
        %v434 = vperm.slane %v432, 0
        %v436 = vadd.f32 %v427, %v434
        %v437 = vadd.f32 %v430, %v434
        %v438 = vmax.f32 %v436, 0.0
        %v439 = vmax.f32 %v437, 0.0
        %440 = vst [vmem:[#allocation2 + $0x1] sm:$0xff] %v438
        %441 = vst [vmem:[#allocation2 + $0x9] sm:$0xff] %v439
        %v442 = vld [vmem:[#allocation2] sm:$0xff]
        %v443 = vld [vmem:[#allocation2 + $0x8] sm:$0xff]
        %v444 = vld [vmem:[#allocation2 + $0x10] sm:$0x1]
        %v445 = vld [vmem:[%s4] sm:$0xff]
        %v446 = vld [vmem:[%s4 + $0x8] sm:$0xff]
        %v447 = vld [vmem:[%s4 + $0x10] sm:$0xff]
        %v448 = vld [vmem:[%s4 + $0x18] sm:$0xff]
        %v449 = vld [vmem:[%s4 + $0x20] sm:$0xff]
        %v450 = vld [vmem:[%s4 + $0x28] sm:$0xff]
        %v451 = vld [vmem:[%s4 + $0x30] sm:$0xff]
        %v452 = vld [vmem:[%s4 + $0x38] sm:$0xff]
        %v453 = vld [vmem:[%s4 + $0x40] sm:$0xff]
        %v454 = vld [vmem:[%s4 + $0x48] sm:$0xff]
        %v455 = vld [vmem:[%s4 + $0x50] sm:$0xff]
        %v456 = vld [vmem:[%s4 + $0x58] sm:$0xff]
        %v457 = vld [vmem:[%s4 + $0x60] sm:$0xff]
        %v458 = vld [vmem:[%s4 + $0x68] sm:$0xff]
        %v459 = vld [vmem:[%s4 + $0x70] sm:$0xff]
        %v460 = vld [vmem:[%s4 + $0x78] sm:$0xff]
        %v461 = vld [vmem:[%s5] sm:$0xff]
        %v462 = vld [vmem:[%s5 + $0x8] sm:$0xff]
        %v463 = vld [vmem:[%s5 + $0x10] sm:$0xff]
        %v464 = vld [vmem:[%s5 + $0x18] sm:$0xff]
        %v465 = vld [vmem:[%s5 + $0x20] sm:$0xff]
        %v466 = vld [vmem:[%s5 + $0x28] sm:$0xff]
        %v467 = vld [vmem:[%s5 + $0x30] sm:$0xff]
        %v468 = vld [vmem:[%s5 + $0x38] sm:$0xff]
        %v469 = vld [vmem:[%s5 + $0x40] sm:$0xff]
        %v470 = vld [vmem:[%s5 + $0x48] sm:$0xff]
        %v471 = vld [vmem:[%s5 + $0x50] sm:$0xff]
        %v472 = vld [vmem:[%s5 + $0x58] sm:$0xff]
        %v473 = vld [vmem:[%s5 + $0x60] sm:$0xff]
        %v474 = vld [vmem:[%s5 + $0x68] sm:$0xff]
        %v475 = vld [vmem:[%s5 + $0x70] sm:$0xff]
        %v476 = vld [vmem:[%s5 + $0x78] sm:$0xff]
        %v480 = vrot.slane %v442, 1
        %v481 = vrot.slane %v443, 1
        %v482 = vsel %vm371, %v480, %v481
        %v483 = vrot.slane %v444, 1
        %v484 = vsel %vm371, %v481, %v483
        %487 = vmatpush.msra.mxu0 %v476
        %488 = vmatpush.msra.mxu0 %v475
        %489 = vmatpush.msra.mxu0 %v474
        %490 = vmatpush.msra.mxu0 %v473
        %491 = vmatpush.msra.mxu0 %v472
        %492 = vmatpush.msra.mxu0 %v471
        %493 = vmatpush.msra.mxu0 %v470
        %494 = vmatpush.msra.mxu0 %v469
        %495 = vmatpush.msra.mxu0 %v468
        %496 = vmatpush.msra.mxu0 %v467
        %497 = vmatpush.msra.mxu0 %v466
        %498 = vmatpush.msra.mxu0 %v465
        %499 = vmatpush.msra.mxu0 %v464
        %500 = vmatpush.msra.mxu0 %v463
        %501 = vmatpush.msra.mxu0 %v462
        %502 = vmatpush.msra.mxu0 %v461
        %503 = vmatmul.f32.gmra.mxu0 %v482
        %v504 = vpop.f32.mrf.mxu0
        %v505 = vadd.f32 0.0, %v504
        %506 = vmatmul.f32.gmra.mxu0 %v484
        %v507 = vpop.f32.mrf.mxu0
        %v508 = vadd.f32 0.0, %v507
        %509 = vdwg.mxu0
        %510 = vmatpush.msra.mxu0 %v460
        %511 = vmatpush.msra.mxu0 %v459
        %512 = vmatpush.msra.mxu0 %v458
        %513 = vmatpush.msra.mxu0 %v457
        %514 = vmatpush.msra.mxu0 %v456
        %515 = vmatpush.msra.mxu0 %v455
        %516 = vmatpush.msra.mxu0 %v454
        %517 = vmatpush.msra.mxu0 %v453
        %518 = vmatpush.msra.mxu0 %v452
        %519 = vmatpush.msra.mxu0 %v451
        %520 = vmatpush.msra.mxu0 %v450
        %521 = vmatpush.msra.mxu0 %v449
        %522 = vmatpush.msra.mxu0 %v448
        %523 = vmatpush.msra.mxu0 %v447
        %524 = vmatpush.msra.mxu0 %v446
        %525 = vmatpush.msra.mxu0 %v445
        %526 = vmatmul.f32.gmra.mxu0 %v442
        %v527 = vpop.f32.mrf.mxu0
        %v528 = vadd.f32 %v505, %v527
        %529 = vmatmul.f32.gmra.mxu0 %v443
        %v530 = vpop.f32.mrf.mxu0
        %v531 = vadd.f32 %v508, %v530
        %532 = vdwg.mxu0
        %v533 = vld [vmem:[%s6] sm:$0x1]
        %v535 = vperm.slane %v533, 0
        %v537 = vadd.f32 %v528, %v535
        %v538 = vadd.f32 %v531, %v535
        %v539 = vmax.f32 %v537, 0.0
        %v540 = vmax.f32 %v538, 0.0
        %541 = vst [vmem:[#allocation2 + $0x1] sm:$0xff] %v539
        %542 = vst [vmem:[#allocation2 + $0x9] sm:$0xff] %v540
        %v543 = vld [vmem:[#allocation2] sm:$0xff]
        %v544 = vld [vmem:[#allocation2 + $0x8] sm:$0xff]
        %v545 = vld [vmem:[#allocation2 + $0x10] sm:$0x1]
        %v546 = vld [vmem:[%s7] sm:$0xff]
        %v547 = vld [vmem:[%s7 + $0x8] sm:$0xff]
        %v548 = vld [vmem:[%s7 + $0x10] sm:$0xff]
        %v549 = vld [vmem:[%s7 + $0x18] sm:$0xff]
        %v550 = vld [vmem:[%s7 + $0x20] sm:$0xff]
        %v551 = vld [vmem:[%s7 + $0x28] sm:$0xff]
        %v552 = vld [vmem:[%s7 + $0x30] sm:$0xff]
        %v553 = vld [vmem:[%s7 + $0x38] sm:$0xff]
        %v554 = vld [vmem:[%s7 + $0x40] sm:$0xff]
        %v555 = vld [vmem:[%s7 + $0x48] sm:$0xff]
        %v556 = vld [vmem:[%s7 + $0x50] sm:$0xff]
        %v557 = vld [vmem:[%s7 + $0x58] sm:$0xff]
        %v558 = vld [vmem:[%s7 + $0x60] sm:$0xff]
        %v559 = vld [vmem:[%s7 + $0x68] sm:$0xff]
        %v560 = vld [vmem:[%s7 + $0x70] sm:$0xff]
        %v561 = vld [vmem:[%s7 + $0x78] sm:$0xff]
        %v562 = vld [vmem:[%s8] sm:$0xff]
        %v563 = vld [vmem:[%s8 + $0x8] sm:$0xff]
        %v564 = vld [vmem:[%s8 + $0x10] sm:$0xff]
        %v565 = vld [vmem:[%s8 + $0x18] sm:$0xff]
        %v566 = vld [vmem:[%s8 + $0x20] sm:$0xff]
        %v567 = vld [vmem:[%s8 + $0x28] sm:$0xff]
        %v568 = vld [vmem:[%s8 + $0x30] sm:$0xff]
        %v569 = vld [vmem:[%s8 + $0x38] sm:$0xff]
        %v570 = vld [vmem:[%s8 + $0x40] sm:$0xff]
        %v571 = vld [vmem:[%s8 + $0x48] sm:$0xff]
        %v572 = vld [vmem:[%s8 + $0x50] sm:$0xff]
        %v573 = vld [vmem:[%s8 + $0x58] sm:$0xff]
        %v574 = vld [vmem:[%s8 + $0x60] sm:$0xff]
        %v575 = vld [vmem:[%s8 + $0x68] sm:$0xff]
        %v576 = vld [vmem:[%s8 + $0x70] sm:$0xff]
        %v577 = vld [vmem:[%s8 + $0x78] sm:$0xff]
        %v581 = vrot.slane %v543, 1
        %v582 = vrot.slane %v544, 1
        %v583 = vsel %vm371, %v581, %v582
        %v584 = vrot.slane %v545, 1
        %v585 = vsel %vm371, %v582, %v584
        %588 = vmatpush.msra.mxu0 %v577
        %589 = vmatpush.msra.mxu0 %v576
        %590 = vmatpush.msra.mxu0 %v575
        %591 = vmatpush.msra.mxu0 %v574
        %592 = vmatpush.msra.mxu0 %v573
        %593 = vmatpush.msra.mxu0 %v572
        %594 = vmatpush.msra.mxu0 %v571
        %595 = vmatpush.msra.mxu0 %v570
        %596 = vmatpush.msra.mxu0 %v569
        %597 = vmatpush.msra.mxu0 %v568
        %598 = vmatpush.msra.mxu0 %v567
        %599 = vmatpush.msra.mxu0 %v566
        %600 = vmatpush.msra.mxu0 %v565
        %601 = vmatpush.msra.mxu0 %v564
        %602 = vmatpush.msra.mxu0 %v563
        %603 = vmatpush.msra.mxu0 %v562
        %604 = vmatmul.f32.gmra.mxu0 %v583
        %v605 = vpop.f32.mrf.mxu0
        %v606 = vadd.f32 0.0, %v605
        %607 = vmatmul.f32.gmra.mxu0 %v585
        %v608 = vpop.f32.mrf.mxu0
        %v609 = vadd.f32 0.0, %v608
        %610 = vdwg.mxu0
        %611 = vmatpush.msra.mxu0 %v561
        %612 = vmatpush.msra.mxu0 %v560
        %613 = vmatpush.msra.mxu0 %v559
        %614 = vmatpush.msra.mxu0 %v558
        %615 = vmatpush.msra.mxu0 %v557
        %616 = vmatpush.msra.mxu0 %v556
        %617 = vmatpush.msra.mxu0 %v555
        %618 = vmatpush.msra.mxu0 %v554
        %619 = vmatpush.msra.mxu0 %v553
        %620 = vmatpush.msra.mxu0 %v552
        %621 = vmatpush.msra.mxu0 %v551
        %622 = vmatpush.msra.mxu0 %v550
        %623 = vmatpush.msra.mxu0 %v549
        %624 = vmatpush.msra.mxu0 %v548
        %625 = vmatpush.msra.mxu0 %v547
        %626 = vmatpush.msra.mxu0 %v546
        %627 = vmatmul.f32.gmra.mxu0 %v543
        %v628 = vpop.f32.mrf.mxu0
        %v629 = vadd.f32 %v606, %v628
        %630 = vmatmul.f32.gmra.mxu0 %v544
        %v631 = vpop.f32.mrf.mxu0
        %v632 = vadd.f32 %v609, %v631
        %633 = vdwg.mxu0
        %v634 = vld [vmem:[%s9] sm:$0x1]
        %v636 = vperm.slane %v634, 0
        %v638 = vadd.f32 %v629, %v636
        %v639 = vadd.f32 %v632, %v636
        %v640 = vxor.u32 %v638, 2147483648
        %v641 = vxor.u32 %v639, 2147483648
        %v642 = vmul.f32 %v640, 1.442695
        %v643 = vpow.pop %v642
        %v644 = vmul.f32 %v641, 1.442695
        %v645 = vpow.pop %v644
        %v646 = vadd.f32 %v643, 1.0
        %v647 = vadd.f32 %v645, 1.0
        %v648 = vrcp.pop %v646
        %v649 = vmul.f32 %v646, %v648
        %v650 = vsub.f32 1.0, %v649
        %v651 = vmul.f32 %v648, %v650
        %v652 = vadd.f32 %v648, %v651
        %vm653 = vweird.f32 %v646
        %vm654 = vweird.f32 %v648
        %vm655 = vmor %vm653, %vm654
        %v656 = vsel %vm655, %v648, %v652
        %v657 = vand.u32 2147483647, %v646
        %vm658 = vcmp.eq.f32.partialorder %v657, 8.507059e+37
        %v659 = vand.u32 %v646, 2147483648
        %v660 = vor.u32 1.1754944e-38, %v659
        %v661 = vsel %vm658, %v660, %v656
        %v662 = vmul.f32 1.0, %v661
        %v663 = vrcp.pop %v647
        %v664 = vmul.f32 %v647, %v663
        %v665 = vsub.f32 1.0, %v664
        %v666 = vmul.f32 %v663, %v665
        %v667 = vadd.f32 %v663, %v666
        %vm668 = vweird.f32 %v647
        %vm669 = vweird.f32 %v663
        %vm670 = vmor %vm668, %vm669
        %v671 = vsel %vm670, %v663, %v667
        %v672 = vand.u32 2147483647, %v647
        %vm673 = vcmp.eq.f32.partialorder %v672, 8.507059e+37
        %v674 = vand.u32 %v647, 2147483648
        %v675 = vor.u32 1.1754944e-38, %v674
        %v676 = vsel %vm673, %v675, %v671
        %v677 = vmul.f32 1.0, %v676
        %678 = vst.msk [vmem:[%s352] sm:$0xff] %vm377, %v662
        %679 = vst.msk [vmem:[%s352 + $0x8] sm:$0xff] %vm377, %v677
        %s680 = sand.u32 %s247, 1
        %s681 = scalar_lea.sflag [#allocation4], %s680
        %s682 = sand.u32 %s247, 1
        %s683 = smul.addr %s682, 16
        %s684 = scalar_lea.vmem [#allocation3], %s683
        // Predicated region
        $region61: #{tpu_custom_call.1} parent=59 // pred_check
          %p685 = pneg %p257
        $region62: #{tpu_custom_call.1} parent=59 // pred_check_branch
          %687 = sbr.rel (%p685) target = $region64
        $region63: #{tpu_custom_call.1} parent=59 // pred_region
          %689 = vsyncadd %s681, 0
          %s690 = smul.addr %s24, 2
          %s691 = smul.addr %s690, 8
          %s692 = scalar_lea.hbm %s10, %s691
          %s693 = sshll.u32 %s684, 4
          %s694 = int_to_ptr.vmem [resolvable:$true] %s693
          %s695 = sshll.u32 %s692, 4
          %s696 = int_to_ptr.hbm [resolvable:$true] %s695
          %701 = dma.vmem_to_hbm [thread:$0]  %s694, 256, %s696, %s681, 128, 128, 8
        $region64: #{tpu_custom_call.1} parent=59 // pred_fallthru
          _
      $region60: #{tpu_custom_call.1} parent=5 // pred_fallthru
        _
      %p702 = scmp.le.s32.totalorder 2, %s19
      // Predicated region
      $region65: #{tpu_custom_call.1} parent=5 // pred_check
        %p703 = pneg %p702
      $region66: #{tpu_custom_call.1} parent=5 // pred_check_branch
        %705 = sbr.rel (%p703) target = $region68
      $region67: #{tpu_custom_call.1} parent=5 // pred_region
        %s706 = ssub.s32 %s19, 2
        // Predicated region
        $region69: #{tpu_custom_call.1} parent=67 // pred_check
          %p707 = pneg %p263
        $region70: #{tpu_custom_call.1} parent=67 // pred_check_branch
          %709 = sbr.rel (%p707) target = $region72
        $region71: #{tpu_custom_call.1} parent=67 // pred_region
          %s710 = sand.u32 %s248, 1
          %s711 = scalar_lea.sflag [#allocation4], %s710
          %s712 = sand.u32 %s248, 1
          %s713 = smul.addr %s712, 16
          %s714 = scalar_lea.vmem [#allocation3], %s713
          %716 = dma.done %s711, 256
        $region72: #{tpu_custom_call.1} parent=67 // pred_fallthru
          _
      $region68: #{tpu_custom_call.1} parent=5 // pred_fallthru
        _
    $region6: #{tpu_custom_call.1} parent=1 // loop_footer
      %s23 = sadd.s32 1, %s19
    $region7: #{tpu_custom_call.1} parent=1 // loop_footer_branch
      %18 = sbr.rel target = $region3
    $region8: #{tpu_custom_call.1} parent=1 // loop_exit
      _
    %717 = vsyncpa [#allocation4], 1
    %s718 = scalar_lea.sflag [#allocation4], 1
    %719 = vsyncpa %s718, 1

</llo_original>
